<compile_context>
chip_gen: v7x
topology: tpu7x:2x2x1
jax: 0.10.0
libtpu: 0.0.40
codegen_flags: <defaults>
</compile_context>

<pallas_src>
import functools

import jax
import jax.numpy as jnp
from jax.experimental import pallas as pl
from jax.experimental.pallas import tpu as pltpu

NEG_INF = -1e9


# ------------------------------------------------------------------ shared in-kernel math

def _layer_norm(y, gamma, beta, eps):
    mu = jnp.mean(y, axis=-1, keepdims=True)
    var = jnp.mean((y - mu) ** 2, axis=-1, keepdims=True)
    return (y - mu) * jax.lax.rsqrt(var + eps) * gamma + beta


def _attn_layer(x, ctx, key_mask, wq, bq, wk, bk, wv, bv, wo, bo, gamma, beta,
                *, num_heads, eps):
    """Multi-head attention + CoModalAttOutput (dense + residual + LayerNorm, eps=1e-12).

    x: (N, D) f32 queries (also the residual), ctx: (L, D) f32 keys/values,
    key_mask: (1, L) f32 additive mask over key positions.
    All projection weights are dense (D, D) bf16; 1/sqrt(head_dim) is folded into wq/bq.
    """
    bf16, f32 = jnp.bfloat16, jnp.float32
    D = x.shape[-1]
    hd = D // num_heads

    # Lane-dense projections: full MXU output/contraction width, no per-head matmuls.
    q = jnp.dot(x.astype(bf16), wq, preferred_element_type=f32) + bq      # (N, D)
    k = jnp.dot(ctx.astype(bf16), wk, preferred_element_type=f32) + bk    # (L, D)
    v = jnp.dot(ctx.astype(bf16), wv, preferred_element_type=f32) + bv    # (L, D)

    # Heads only exist for the score / PV matmuls (static unroll, H small).
    o_parts = []
    for h in range(num_heads):
        sl = slice(h * hd, (h + 1) * hd)
        qh = q[:, sl].astype(bf16)                                        # (N, hd)
        kh = k[:, sl].astype(bf16)                                        # (L, hd)
        vh = v[:, sl].astype(bf16)                                        # (L, hd)
        s = jax.lax.dot_general(qh, kh, (((1,), (1,)), ((), ())),
                                preferred_element_type=f32) + key_mask    # (N, L)
        s = s - jnp.max(s, axis=-1, keepdims=True)
        p = jnp.exp(s)
        p = p / jnp.sum(p, axis=-1, keepdims=True)        # exact softmax (parity)
        o_parts.append(jnp.dot(p.astype(bf16), vh, preferred_element_type=f32))
    o = jnp.concatenate(o_parts, axis=-1)                 # (N, D): one lane concat
    # TODO(synk): at production sizes (long L) tile keys with an online softmax instead
    #             of materializing the full (N, L) scores per head.

    proj = jnp.dot(o.astype(bf16), wo, preferred_element_type=f32) + bo   # (N, D)

    # ---- CoModalAttOutput: dense above, dropout = identity (eval), LayerNorm(.+residual)
    return _layer_norm(proj + x, gamma, beta, eps)


def _ffn(x, w1, b1, w2, b2, gamma, beta, *, eps):
    """CoModalIntermediate (GELU) + CoModalOutput (dense + residual + LayerNorm)."""
    bf16, f32 = jnp.bfloat16, jnp.float32
    h = jnp.dot(x.astype(bf16), w1, preferred_element_type=f32) + b1
    # TODO(synk): switch to approximate=False if the production FFN uses exact erf-GELU.
    h = jax.nn.gelu(h, approximate=True)                  # tanh-GELU rides the EUP slot
    y = jnp.dot(h.astype(bf16), w2, preferred_element_type=f32) + b2 + x
    return _layer_norm(y, gamma, beta, eps)


# ------------------------------------------------------------------ standalone CoModalAttOutput

def att_output_kernel(h_ref, x_ref, w_ref, b_ref, g_ref, beta_ref, o_ref, *, eps):
    proj = jnp.dot(h_ref[...].astype(jnp.bfloat16), w_ref[...],
                   preferred_element_type=jnp.float32) + b_ref[...]
    # dropout = identity in eval
    o_ref[...] = _layer_norm(proj + x_ref[...], g_ref[...], beta_ref[...], eps)


def co_modal_att_output(hidden_states, input_tensor, w, b, gamma, beta,
                        *, eps=1e-12, row_block=256):
    """Exact CoModalAttOutput.forward: LayerNorm(dense(hidden) + input_tensor)."""
    B, N, D = hidden_states.shape
    R = B * N
    rb = R if R <= row_block else row_block               # fat blocks; rows are independent
    r_pad = ((R + rb - 1) // rb) * rb
    h2 = hidden_states.reshape(R, D)
    x2 = input_tensor.reshape(R, D)
    if r_pad != R:
        pad = ((0, r_pad - R), (0, 0))
        h2 = jnp.pad(h2, pad)
        x2 = jnp.pad(x2, pad)

    ce = pl.CostEstimate(flops=2 * r_pad * D * D + 10 * r_pad * D,
                         transcendentals=r_pad,
                         bytes_accessed=(3 * r_pad * D + D * D + 3 * D) * 4)

    kernel = functools.partial(att_output_kernel, eps=eps)
    out = pl.pallas_call(
        kernel,
        out_shape=jax.ShapeDtypeStruct((r_pad, D), jnp.float32),
        grid=(r_pad // rb,),
        in_specs=[
            pl.BlockSpec((rb, D), lambda i: (i, 0)),
            pl.BlockSpec((rb, D), lambda i: (i, 0)),
            pl.BlockSpec((D, D), lambda i: (0, 0)),
            pl.BlockSpec((1, D), lambda i: (0, 0)),
            pl.BlockSpec((1, D), lambda i: (0, 0)),
            pl.BlockSpec((1, D), lambda i: (0, 0)),
        ],
        out_specs=pl.BlockSpec((rb, D), lambda i: (i, 0)),
        compiler_params=pltpu.CompilerParams(
            dimension_semantics=("parallel",),
            vmem_limit_bytes=32 * 1024 * 1024),
        cost_estimate=ce,
    )(h2, x2, w.astype(jnp.bfloat16), b.astype(jnp.float32),
      gamma.astype(jnp.float32), beta.astype(jnp.float32))
    # TODO(synk): if production D stays <128, present a lane-dense (R*D/128, 128) output
    #             slab instead (D=32 stores are masked vst); moot for D>=128 (e.g. 768).
    return out[:R].reshape(B, N, D)


# ------------------------------------------------------------------ fused CoModalCrossBlock

def fused_block_kernel(
        x_ref, cmask_ref, smask_ref,
        cwq, cbq, cwk, cbk, cwv, cbv, cwo, cbo, cg, cbt,   # co_cross_attn (shared)
        swq, sbq, swk, sbk, swv, sbv, swo, sbo, sg, sbt,   # sa_audio (shared)
        fw1, fb1, fw2, fb2, fg, fbt,                       # per-stream FFN (stacked)
        out_ref, *, num_heads, batch, attn_eps, ffn_eps):
    s = pl.program_id(0)
    x_own = x_ref[s]          # (B, Nmax, D)  this stream (queries / residual)
    x_other = x_ref[1 - s]    # (B, Nmax, D)  other stream (cross keys/values)
    cmask = cmask_ref[0]      # (B, 1, Nmax)  additive cross-attn key mask
    smask = smask_ref[0]      # (B, 1, Nmax)  additive self-attn key mask

    for b in range(batch):    # batch folded into the block: only 2 fat grid steps total
        x = x_own[b]
        ctx = x_other[b]
        # 1) cross attention (co_cross_attn_audio weights shared by both streams)
        h = _attn_layer(x, ctx, cmask[b],
                        cwq[...], cbq[...], cwk[...], cbk[...], cwv[...], cbv[...],
                        cwo[...], cbo[...], cg[...], cbt[...],
                        num_heads=num_heads, eps=attn_eps)
        # 2) self attention (sa_audio weights used for BOTH streams, as in reference code)
        h = _attn_layer(h, h, smask[b],
                        swq[...], sbq[...], swk[...], sbk[...], swv[...], sbv[...],
                        swo[...], sbo[...], sg[...], sbt[...],
                        num_heads=num_heads, eps=attn_eps)
        # 3) per-stream FFN (video_inter/video_output vs audio_inter/audio_output)
        h = _ffn(h, fw1[0], fb1[0], fw2[0], fb2[0], fg[0], fbt[0], eps=ffn_eps)
        out_ref[0, b] = h
    # TODO(synk): at production sizes (D>=768, dh>=3072, long seq) push the key and dh
    #             axes into the grid (flash-style) and re-derive the 64 MiB/TC v7x budget.


def _prep_attn_params(p, num_heads):
    """Cast to MXU dtypes; fold the 1/sqrt(head_dim) scale into the Q projection."""
    wq, bq, wk, bk, wv, bv, wo, bo, g, beta = p
    D = wq.shape[0]
    scale = (D // num_heads) ** -0.5
    bf16, f32 = jnp.bfloat16, jnp.float32
    return ((wq * scale).astype(bf16), (bq * scale).astype(f32),
            wk.astype(bf16), bk.astype(f32),
            wv.astype(bf16), bv.astype(f32),
            wo.astype(bf16), bo.astype(f32),
            g.astype(f32), beta.astype(f32))


def _pad_seq(x, n_max):
    B, N, D = x.shape
    if N == n_max:
        return x
    return jnp.concatenate([x, jnp.zeros((B, n_max - N, D), x.dtype)], axis=1)


def _key_mask(valid_len, n_max, batch, user_mask):
    """Additive key mask (B, 1, n_max): 0 for valid keys, -1e9 for padded keys."""
    base = jnp.where(jnp.arange(n_max) < valid_len, 0.0, NEG_INF).astype(jnp.float32)
    m = jnp.broadcast_to(base, (batch, 1, n_max))
    if user_mask is not None:
        # accepts (B, L), (B, 1, L) or PyTorch-style (B, 1, 1, L) additive masks
        um = jnp.asarray(user_mask, jnp.float32).reshape(batch, 1, -1)
        um = jnp.pad(um, ((0, 0), (0, 0), (0, n_max - um.shape[-1])))
        m = m + um
    return m


def co_modal_cross_block(video, audio, params, *, num_heads, ffn_eps,
                         video_mask=None, audio_mask=None, attn_eps=1e-12):
    """CoModalCrossBlock.forward (output_attentions=False) as ONE fused pallas_call."""
    B, n_video, D = video.shape
    _, n_audio, _ = audio.shape
    n_max = max(n_video, n_audio)
    dh = params["video_ffn"][0].shape[1]

    # stream 0 = video path (queries=video, cross keys=audio, FFN=video_ffn)
    # stream 1 = audio path (queries=audio, cross keys=video, FFN=audio_ffn)
    x_all = jnp.stack([_pad_seq(video, n_max), _pad_seq(audio, n_max)], axis=0)

    video_keys = _key_mask(n_video, n_max, B, video_mask)          # (B, 1, n_max)
    audio_keys = _key_mask(n_audio, n_max, B, audio_mask)
    cross_mask = jnp.stack([audio_keys, video_keys], axis=0)       # attend the other stream
    self_mask = jnp.stack([video_keys, audio_keys], axis=0)        # attend own stream

    cross_p = _prep_attn_params(params["cross"], num_heads)
    sa_p = _prep_attn_params(params["sa_audio"], num_heads)

    vw1, vb1, vw2, vb2, vg, vbe = params["video_ffn"]
    aw1, ab1, aw2, ab2, ag, abe = params["audio_ffn"]
    ffn_p = (jnp.stack([vw1, aw1]).astype(jnp.bfloat16),
             jnp.stack([vb1, ab1]).astype(jnp.float32),
             jnp.stack([vw2, aw2]).astype(jnp.bfloat16),
             jnp.stack([vb2, ab2]).astype(jnp.float32),
             jnp.stack([vg, ag]).astype(jnp.float32),
             jnp.stack([vbe, abe]).astype(jnp.float32))

    def const_spec(shape):                 # weights shared by every grid step
        nd = len(shape)
        return pl.BlockSpec(shape, lambda s: (0,) * nd)

    def stream_spec(shape):                # weights stacked per stream
        nd = len(shape)
        return pl.BlockSpec((1,) + shape[1:], lambda s: (s,) + (0,) * (nd - 1))

    attn_specs = [const_spec((D, D)), const_spec((1, D)),
                  const_spec((D, D)), const_spec((1, D)),
                  const_spec((D, D)), const_spec((1, D)),
                  const_spec((D, D)), const_spec((1, D)),
                  const_spec((1, D)), const_spec((1, D))]
    ffn_specs = [stream_spec((2, D, dh)), stream_spec((2, 1, dh)),
                 stream_spec((2, dh, D)), stream_spec((2, 1, D)),
                 stream_spec((2, 1, D)), stream_spec((2, 1, D))]

    in_specs = ([pl.BlockSpec((2, B, n_max, D), lambda s: (0, 0, 0, 0)),   # x_all (ONCE)
                 pl.BlockSpec((1, B, 1, n_max), lambda s: (s, 0, 0, 0)),   # cross mask
                 pl.BlockSpec((1, B, 1, n_max), lambda s: (s, 0, 0, 0))]   # self mask
                + attn_specs + attn_specs + ffn_specs)

    attn_layer_flops = 4 * (2 * n_max * D * D) + 2 * (2 * n_max * n_max * D)
    ffn_flops = 2 * (2 * n_max * D * dh)
    ce = pl.CostEstimate(
        flops=2 * B * (2 * attn_layer_flops + ffn_flops),
        transcendentals=2 * B * (2 * num_heads * n_max * n_max + n_max * dh),
        bytes_accessed=(2 * 2 * B * n_max * D * 4      # activations in + out (f32)
                        + 2 * 2 * B * n_max * 4        # masks
                        + 2 * 4 * D * D * 2            # attention weights (bf16)
                        + 2 * 2 * D * dh * 2))         # FFN weights (bf16)

    kernel = functools.partial(fused_block_kernel, num_heads=num_heads, batch=B,
                               attn_eps=attn_eps, ffn_eps=ffn_eps)
    out = pl.pallas_call(
        kernel,
        out_shape=jax.ShapeDtypeStruct((2, B, n_max, D), jnp.float32),
        grid=(2,),
        in_specs=in_specs,
        out_specs=pl.BlockSpec((1, B, n_max, D), lambda s: (s, 0, 0, 0)),
        compiler_params=pltpu.CompilerParams(
            dimension_semantics=("parallel",),         # stream axis -> 2 TCs on v7x
            vmem_limit_bytes=32 * 1024 * 1024),
        cost_estimate=ce,
    )(x_all, cross_mask, self_mask, *cross_p, *sa_p, *ffn_p)

    return out[0, :, :n_video, :], out[1, :, :n_audio, :]
    # TODO(synk): output_attentions=True (softmax probability maps) not wired out.


# ------------------------------------------------------------------ pure-JAX references
# (mirror the kernel's bf16-operand / f32-accumulation MXU precision, exact softmax)

def _ref_attn_layer(x, ctx, p, num_heads, eps):
    wq, bq, wk, bk, wv, bv, wo, bo, g, beta = p
    bf16, f32 = jnp.bfloat16, jnp.float32
    B, N, D = x.shape
    L = ctx.shape[1]
    hd = D // num_heads
    scale = hd ** -0.5
    q = jnp.einsum('bnd,de->bne', x.astype(bf16), (wq * scale).astype(bf16),
                   preferred_element_type=f32) + bq * scale
    k = jnp.einsum('bld,de->ble', ctx.astype(bf16), wk.astype(bf16),
                   preferred_element_type=f32) + bk
    v = jnp.einsum('bld,de->ble', ctx.astype(bf16), wv.astype(bf16),
                   preferred_element_type=f32) + bv
    qh = q.reshape(B, N, num_heads, hd)
    kh = k.reshape(B, L, num_heads, hd)
    vh = v.reshape(B, L, num_heads, hd)
    s = jnp.einsum('bnhe,blhe->bhnl', qh.astype(bf16), kh.astype(bf16),
                   preferred_element_type=f32)
    prob = jax.nn.softmax(s, axis=-1)
    o = jnp.einsum('bhnl,blhe->bnhe', prob.astype(bf16), vh.astype(bf16),
                   preferred_element_type=f32).reshape(B, N, D)
    proj = jnp.einsum('bnd,de->bne', o.astype(bf16), wo.astype(bf16),
                      preferred_element_type=f32) + bo
    y = proj + x
    mu = y.mean(-1, keepdims=True)
    var = ((y - mu) ** 2).mean(-1, keepdims=True)
    return (y - mu) / jnp.sqrt(var + eps) * g + beta


def _ref_ffn(x, p, eps):
    w1, b1, w2, b2, g, beta = p
    bf16, f32 = jnp.bfloat16, jnp.float32
    h = jnp.einsum('bnd,dk->bnk', x.astype(bf16), w1.astype(bf16),
                   preferred_element_type=f32) + b1
    h = jax.nn.gelu(h, approximate=True)
    y = jnp.einsum('bnk,kd->bnd', h.astype(bf16), w2.astype(bf16),
                   preferred_element_type=f32) + b2 + x
    mu = y.mean(-1, keepdims=True)
    var = ((y - mu) ** 2).mean(-1, keepdims=True)
    return (y - mu) / jnp.sqrt(var + eps) * g + beta


def _ref_block(video, audio, params, num_heads, ffn_eps):
    cv = _ref_attn_layer(video, audio, params["cross"], num_heads, 1e-12)
    ca = _ref_attn_layer(audio, video, params["cross"], num_heads, 1e-12)
    ca = _ref_attn_layer(ca, ca, params["sa_audio"], num_heads, 1e-12)
    cv = _ref_attn_layer(cv, cv, params["sa_audio"], num_heads, 1e-12)
    cv = _ref_ffn(cv, params["video_ffn"], ffn_eps)
    ca = _ref_ffn(ca, params["audio_ffn"], ffn_eps)
    return cv, ca


def _ref_att_output(hidden, inp, w, b, g, beta, eps=1e-12):
    bf16, f32 = jnp.bfloat16, jnp.float32
    y = jnp.einsum('bnd,de->bne', hidden.astype(bf16), w.astype(bf16),
                   preferred_element_type=f32) + b + inp
    mu = y.mean(-1, keepdims=True)
    var = ((y - mu) ** 2).mean(-1, keepdims=True)
    return (y - mu) / jnp.sqrt(var + eps) * g + beta


# ------------------------------------------------------------------ param init

def _init_linear(key, d_in, d_out):
    kw, kb = jax.random.split(key)
    w = jax.random.normal(kw, (d_in, d_out), jnp.float32) * 0.02
    b = jax.random.normal(kb, (1, d_out), jnp.float32) * 0.02
    return w, b


def _init_attn_layer(key, d):
    kq, kk, kv, ko = jax.random.split(key, 4)
    wq, bq = _init_linear(kq, d, d)
    wk, bk = _init_linear(kk, d, d)
    wv, bv = _init_linear(kv, d, d)
    wo, bo = _init_linear(ko, d, d)
    return (wq, bq, wk, bk, wv, bv, wo, bo,
            jnp.ones((1, d), jnp.float32), jnp.zeros((1, d), jnp.float32))


def _init_ffn(key, d, factor):
    k1, k2 = jax.random.split(key)
    w1, b1 = _init_linear(k1, d, d * factor)
    w2, b2 = _init_linear(k2, d * factor, d)
    return (w1, b1, w2, b2,
            jnp.ones((1, d), jnp.float32), jnp.zeros((1, d), jnp.float32))


# ------------------------------------------------------------------ main

if __name__ == "__main__":
    B, N_VIDEO, N_AUDIO, D, H, FACTOR = 2, 8, 16, 32, 4, 4
    FFN_EPS = 1e-6

    key = jax.random.PRNGKey(0)
    k_params, k_v, k_a, k_h = jax.random.split(key, 4)
    k_cross, k_sa, k_vffn, k_affn = jax.random.split(k_params, 4)

    params = {
        "cross": _init_attn_layer(k_cross, D),
        "sa_audio": _init_attn_layer(k_sa, D),
        "video_ffn": _init_ffn(k_vffn, D, FACTOR),
        "audio_ffn": _init_ffn(k_affn, D, FACTOR),
    }

    video = jax.random.normal(k_v, (B, N_VIDEO, D), jnp.float32)
    audio = jax.random.normal(k_a, (B, N_AUDIO, D), jnp.float32)

    # ---- standalone CoModalAttOutput (the spec module) ----
    wo, bo, g, beta = (params["cross"][6], params["cross"][7],
                       params["cross"][8], params["cross"][9])
    hidden_states = jax.random.normal(k_h, (B, N_VIDEO, D), jnp.float32)
    att_out = jax.block_until_ready(
        co_modal_att_output(hidden_states, video, wo, bo, g, beta))
    att_ref = _ref_att_output(hidden_states, video, wo, bo, g, beta)
    assert att_out.shape == (B, N_VIDEO, D)
    assert jnp.allclose(att_out, att_ref, atol=3e-2, rtol=3e-2), \
        float(jnp.max(jnp.abs(att_out - att_ref)))

    # ---- fused CoModalCrossBlock (CoModalAttOutput embedded in each attention layer) ----
    out_video, out_audio = co_modal_cross_block(
        video, audio, params, num_heads=H, ffn_eps=FFN_EPS)
    out_video = jax.block_until_ready(out_video)
    out_audio = jax.block_until_ready(out_audio)

    ref_video, ref_audio = _ref_block(video, audio, params, H, FFN_EPS)
    assert out_video.shape == (B, N_VIDEO, D) and out_audio.shape == (B, N_AUDIO, D)
    assert jnp.allclose(out_video, ref_video, atol=3e-2, rtol=3e-2), \
        float(jnp.max(jnp.abs(out_video - ref_video)))
    assert jnp.allclose(out_audio, ref_audio, atol=3e-2, rtol=3e-2), \
        float(jnp.max(jnp.abs(out_audio - ref_audio)))

    print("KERNEL_OK")
</pallas_src>

<mosaic_0001>
module attributes {stable_mosaic.version = 11 : i64} {
  func.func @att_output_kernel(%arg0: i32, %arg1: memref<16x32xf32, #tpu.memory_space<vmem>>, %arg2: memref<16x32xf32, #tpu.memory_space<vmem>>, %arg3: memref<32x32xbf16, #tpu.memory_space<vmem>>, %arg4: memref<1x32xf32, #tpu.memory_space<vmem>>, %arg5: memref<1x32xf32, #tpu.memory_space<vmem>>, %arg6: memref<1x32xf32, #tpu.memory_space<vmem>>, %arg7: memref<16x32xf32, #tpu.memory_space<vmem>>) attributes {dimension_semantics = [#tpu.dimension_semantics<parallel>], iteration_bounds = array<i64: 1>, scalar_prefetch = 0 : i64, scratch_operands = 0 : i64, tpu.core_type = #tpu.core_type<tc>, window_params = [{transform_indices = @transform_0, window_bounds = array<i64: 16, 32>}, {transform_indices = @transform_1, window_bounds = array<i64: 16, 32>}, {pipeline_mode = #tpu.pipeline_mode<synchronous>, transform_indices = @transform_2, window_bounds = array<i64: 32, 32>}, {pipeline_mode = #tpu.pipeline_mode<synchronous>, transform_indices = @transform_3, window_bounds = array<i64: 1, 32>}, {pipeline_mode = #tpu.pipeline_mode<synchronous>, transform_indices = @transform_4, window_bounds = array<i64: 1, 32>}, {pipeline_mode = #tpu.pipeline_mode<synchronous>, transform_indices = @transform_5, window_bounds = array<i64: 1, 32>}, {transform_indices = @transform_6, window_bounds = array<i64: 16, 32>}]} {
    %c0 = arith.constant 0 : index
    %c0_0 = arith.constant 0 : index
    %0 = vector.load %arg1[%c0, %c0_0] : memref<16x32xf32, #tpu.memory_space<vmem>>, vector<16x32xf32>
    %1 = arith.truncf %0 : vector<16x32xf32> to vector<16x32xbf16>
    %c0_1 = arith.constant 0 : index
    %c0_2 = arith.constant 0 : index
    %2 = vector.load %arg3[%c0_1, %c0_2] : memref<32x32xbf16, #tpu.memory_space<vmem>>, vector<32x32xbf16>
    %cst = arith.constant dense<0.000000e+00> : vector<16x32xf32>
    %3 = tpu.matmul %1, %2, %cst {dimension_numbers = #tpu.dot_dimension_numbers<[1], [0], [0], [1], [0, 0, 1, 1], [], []>} : vector<16x32xbf16>, vector<32x32xbf16>, vector<16x32xf32> -> vector<16x32xf32>
    %c0_3 = arith.constant 0 : index
    %c0_4 = arith.constant 0 : index
    %4 = vector.load %arg4[%c0_3, %c0_4] : memref<1x32xf32, #tpu.memory_space<vmem>>, vector<1x32xf32>
    %5 = vector.broadcast %4 : vector<1x32xf32> to vector<16x32xf32>
    %6 = arith.addf %3, %5 : vector<16x32xf32>
    %c0_5 = arith.constant 0 : index
    %c0_6 = arith.constant 0 : index
    %7 = vector.load %arg2[%c0_5, %c0_6] : memref<16x32xf32, #tpu.memory_space<vmem>>, vector<16x32xf32>
    %8 = arith.addf %6, %7 : vector<16x32xf32>
    %c0_7 = arith.constant 0 : index
    %c0_8 = arith.constant 0 : index
    %9 = vector.load %arg5[%c0_7, %c0_8] : memref<1x32xf32, #tpu.memory_space<vmem>>, vector<1x32xf32>
    %c0_9 = arith.constant 0 : index
    %c0_10 = arith.constant 0 : index
    %10 = vector.load %arg6[%c0_9, %c0_10] : memref<1x32xf32, #tpu.memory_space<vmem>>, vector<1x32xf32>
    %cst_11 = arith.constant dense<0.000000e+00> : vector<16xf32>
    %11 = vector.multi_reduction <add>, %8, %cst_11 [1] : vector<16x32xf32> to vector<16xf32>
    %12 = vector.shape_cast %11 : vector<16xf32> to vector<16x1xf32>
    %cst_12 = arith.constant 3.200000e+01 : f32
    %13 = vector.broadcast %cst_12 : f32 to vector<16x1xf32>
    %14 = arith.divf %12, %13 : vector<16x1xf32>
    %15 = vector.broadcast %14 : vector<16x1xf32> to vector<16x32xf32>
    %16 = arith.subf %8, %15 : vector<16x32xf32>
    %17 = arith.mulf %16, %16 : vector<16x32xf32>
    %cst_13 = arith.constant dense<0.000000e+00> : vector<16xf32>
    %18 = vector.multi_reduction <add>, %17, %cst_13 [1] : vector<16x32xf32> to vector<16xf32>
    %19 = vector.shape_cast %18 : vector<16xf32> to vector<16x1xf32>
    %cst_14 = arith.constant 3.200000e+01 : f32
    %20 = vector.broadcast %cst_14 : f32 to vector<16x1xf32>
    %21 = arith.divf %19, %20 : vector<16x1xf32>
    %22 = vector.broadcast %14 : vector<16x1xf32> to vector<16x32xf32>
    %23 = arith.subf %8, %22 : vector<16x32xf32>
    %cst_15 = arith.constant 9.99999996E-13 : f32
    %24 = vector.broadcast %cst_15 : f32 to vector<16x1xf32>
    %25 = arith.addf %21, %24 : vector<16x1xf32>
    %26 = math.rsqrt %25 : vector<16x1xf32>
    %27 = vector.broadcast %26 : vector<16x1xf32> to vector<16x32xf32>
    %28 = arith.mulf %23, %27 : vector<16x32xf32>
    %29 = vector.broadcast %9 : vector<1x32xf32> to vector<16x32xf32>
    %30 = arith.mulf %28, %29 : vector<16x32xf32>
    %31 = vector.broadcast %10 : vector<1x32xf32> to vector<16x32xf32>
    %32 = arith.addf %30, %31 : vector<16x32xf32>
    %c0_16 = arith.constant 0 : index
    %c0_17 = arith.constant 0 : index
    %33 = vector.load %arg7[%c0_16, %c0_17] : memref<16x32xf32, #tpu.memory_space<vmem>>, vector<16x32xf32>
    tpu.vector_store %arg7[%c0_16, %c0_17], %32 {strides = array<i32>} : memref<16x32xf32, #tpu.memory_space<vmem>>, vector<16x32xf32>,
    return
  }
  func.func @transform_0(%arg0: i32) -> (i32, i32) {
    %c0_i32 = arith.constant 0 : i32
    %c0_i32_0 = arith.constant 0 : i32
    return %arg0, %c0_i32 : i32, i32
  }
  func.func @transform_1(%arg0: i32) -> (i32, i32) {
    %c0_i32 = arith.constant 0 : i32
    %c0_i32_0 = arith.constant 0 : i32
    return %arg0, %c0_i32 : i32, i32
  }
  func.func @transform_2(%arg0: i32) -> (i32, i32) {
    %c0_i32 = arith.constant 0 : i32
    %c0_i32_0 = arith.constant 0 : i32
    %c0_i32_1 = arith.constant 0 : i32
    return %c0_i32, %c0_i32_0 : i32, i32
  }
  func.func @transform_3(%arg0: i32) -> (i32, i32) {
    %c0_i32 = arith.constant 0 : i32
    %c0_i32_0 = arith.constant 0 : i32
    %c0_i32_1 = arith.constant 0 : i32
    return %c0_i32, %c0_i32_0 : i32, i32
  }
  func.func @transform_4(%arg0: i32) -> (i32, i32) {
    %c0_i32 = arith.constant 0 : i32
    %c0_i32_0 = arith.constant 0 : i32
    %c0_i32_1 = arith.constant 0 : i32
    return %c0_i32, %c0_i32_0 : i32, i32
  }
  func.func @transform_5(%arg0: i32) -> (i32, i32) {
    %c0_i32 = arith.constant 0 : i32
    %c0_i32_0 = arith.constant 0 : i32
    %c0_i32_1 = arith.constant 0 : i32
    return %c0_i32, %c0_i32_0 : i32, i32
  }
  func.func @transform_6(%arg0: i32) -> (i32, i32) {
    %c0_i32 = arith.constant 0 : i32
    %c0_i32_0 = arith.constant 0 : i32
    return %arg0, %c0_i32 : i32, i32
  }
}

</mosaic_0001>

<llo_original>
// kernel: tpu_custom_call.1
$region0: #{tpu_custom_call.1}
  #allocation0 [shape = 'u32[]', space=smem, size = 0x4, offset = 0x4, fixed_abs, tag = 'smem constant byte address 0x4 - core index']
  #allocation1 [shape = 'u32[144,128]{1,0:T(1,128)}', space=vmem, size = 0x12000, scoped, tag = 'internal scratch']
  %s0 = inlined_call_operand.hbm [shape: f32[16,32], index: 0, kind: input, shape index: {}]
  %s1 = inlined_call_operand.hbm [shape: f32[16,32], index: 1, kind: input, shape index: {}]
  %s2 = inlined_call_operand.hbm [shape: bf16[32,32], index: 2, kind: input, shape index: {}]
  %s3 = inlined_call_operand.vmem [shape: f32[1,32], index: 3, kind: input, shape index: {}]
  %s4 = inlined_call_operand.vmem [shape: f32[1,32], index: 4, kind: input, shape index: {}]
  %s5 = inlined_call_operand.vmem [shape: f32[1,32], index: 5, kind: input, shape index: {}]
  %s6 = inlined_call_operand.hbm [shape: f32[16,32], index: 6, kind: output, shape index: {}]
  %s7 = sld [smem:[#allocation0]]
  $region46: #{tpu_custom_call.1} parent=0
    _
  %s9 = ssub.s32 1, %s7
  %s10 = scalar_select 0, %s9, %s7
  $region1: #{tpu_custom_call.1} parent=0
    #allocation2 [shape = 'u8[8192]{0}', space=vmem, size = 0x2000, scoped, tag = 'input window, operand 0, single buffered']
    #allocation3 [shape = 's32[1]{0}', space=sflag, size = 0x4, scoped, tag = 'scoped memory for tpu_custom_call.1']
    #allocation4 [shape = 's32[1]{0}', space=sflag, size = 0x4, scoped, tag = 'scoped memory for tpu_custom_call.1']
    #allocation5 [shape = 'u8[8192]{0}', space=vmem, size = 0x2000, scoped, tag = 'input window, operand 1, single buffered']
    #allocation6 [shape = 's32[1]{0}', space=sflag, size = 0x4, scoped, tag = 'scoped memory for tpu_custom_call.1']
    #allocation7 [shape = 'u8[8192]{0}', space=vmem, size = 0x2000, scoped, tag = 'input window, operand 2, single buffered']
    #allocation8 [shape = 'u8[8192]{0}', space=vmem, size = 0x2000, scoped, tag = 'output window, operand 0, single buffered']
    %11 = vsyncpa [#allocation3], 0
    %12 = vsyncpa [#allocation6], 0
    %13 = vsyncpa [#allocation4], 0
    // Predicated region
    $region2: #{tpu_custom_call.1} parent=1 // pred_check
      _
    $region3: #{tpu_custom_call.1} parent=1 // pred_check_branch
      %15 = sbr.rel (0) target = $region5
    $region4: #{tpu_custom_call.1} parent=1 // pred_region
      %s17 = ssub.s32 256, 256
      %18 = vsyncadd [#allocation3], %s17
      %s19 = sshll.u32 [#allocation2], 4
      %s20 = int_to_ptr.vmem [resolvable:$true] %s19
      %25 = dma.hbm_to_vmem [thread:$0]  %s0, 256, %s20, [#allocation3], 128, 128, 8
    $region5: #{tpu_custom_call.1} parent=1 // pred_fallthru
      _
    // Predicated region
    $region6: #{tpu_custom_call.1} parent=1 // pred_check
      _
    $region7: #{tpu_custom_call.1} parent=1 // pred_check_branch
      %27 = sbr.rel (0) target = $region9
    $region8: #{tpu_custom_call.1} parent=1 // pred_region
      %s29 = ssub.s32 256, 256
      %30 = vsyncadd [#allocation6], %s29
      %s31 = sshll.u32 [#allocation5], 4
      %s32 = int_to_ptr.vmem [resolvable:$true] %s31
      %37 = dma.hbm_to_vmem [thread:$0]  %s1, 256, %s32, [#allocation6], 128, 128, 8
    $region9: #{tpu_custom_call.1} parent=1 // pred_fallthru
      _
    // Predicated region
    $region10: #{tpu_custom_call.1} parent=1 // pred_check
      _
    $region11: #{tpu_custom_call.1} parent=1 // pred_check_branch
      %39 = sbr.rel (0) target = $region13
    $region12: #{tpu_custom_call.1} parent=1 // pred_region
      %s41 = ssub.s32 256, 256
      %42 = vsyncadd [#allocation6], %s41
      %s43 = sshll.u32 [#allocation7], 4
      %s44 = int_to_ptr.vmem [resolvable:$true] %s43
      %49 = dma.hbm_to_vmem [thread:$0]  %s2, 256, %s44, [#allocation6], 64, 64, 4
    $region13: #{tpu_custom_call.1} parent=1 // pred_fallthru
      _
    // Predicated region
    $region14: #{tpu_custom_call.1} parent=1 // pred_check
      _
    $region15: #{tpu_custom_call.1} parent=1 // pred_check_branch
      %51 = sbr.rel (0) target = $region17
    $region16: #{tpu_custom_call.1} parent=1 // pred_region
      _
    $region17: #{tpu_custom_call.1} parent=1 // pred_fallthru
      _
    // Predicated region
    $region18: #{tpu_custom_call.1} parent=1 // pred_check
      _
    $region19: #{tpu_custom_call.1} parent=1 // pred_check_branch
      %53 = sbr.rel (0) target = $region21
    $region20: #{tpu_custom_call.1} parent=1 // pred_region
      _
    $region21: #{tpu_custom_call.1} parent=1 // pred_fallthru
      _
    // Predicated region
    $region22: #{tpu_custom_call.1} parent=1 // pred_check
      _
    $region23: #{tpu_custom_call.1} parent=1 // pred_check_branch
      %55 = sbr.rel (0) target = $region25
    $region24: #{tpu_custom_call.1} parent=1 // pred_region
      _
    $region25: #{tpu_custom_call.1} parent=1 // pred_fallthru
      _
    // Predicated region
    $region26: #{tpu_custom_call.1} parent=1 // pred_check
      _
    $region27: #{tpu_custom_call.1} parent=1 // pred_check_branch
      %57 = sbr.rel (0) target = $region29
    $region28: #{tpu_custom_call.1} parent=1 // pred_region
      %58 = dma.done [#allocation3], 256
    $region29: #{tpu_custom_call.1} parent=1 // pred_fallthru
      _
    // Predicated region
    $region30: #{tpu_custom_call.1} parent=1 // pred_check
      _
    $region31: #{tpu_custom_call.1} parent=1 // pred_check_branch
      %60 = sbr.rel (0) target = $region33
    $region32: #{tpu_custom_call.1} parent=1 // pred_region
      %61 = dma.done [#allocation6], 256
    $region33: #{tpu_custom_call.1} parent=1 // pred_fallthru
      _
    // Predicated region
    $region34: #{tpu_custom_call.1} parent=1 // pred_check
      _
    $region35: #{tpu_custom_call.1} parent=1 // pred_check_branch
      %63 = sbr.rel (0) target = $region37
    $region36: #{tpu_custom_call.1} parent=1 // pred_region
      %64 = dma.done [#allocation6], 256
    $region37: #{tpu_custom_call.1} parent=1 // pred_fallthru
      _
    %v66 = vld [vmem:[#allocation2] sm:$0xff]
    %v67 = vld [vmem:[#allocation2 + $0x8] sm:$0xff]
    %v68 = vpack.c.bf16 %v67, %v66
    %v69 = vld [vmem:[#allocation7] sm:$0xf]
    %v70 = vld [vmem:[#allocation7 + $0x4] sm:$0xf]
    %v71 = vld [vmem:[#allocation7 + $0x8] sm:$0xf]
    %v72 = vld [vmem:[#allocation7 + $0xc] sm:$0xf]
    %v73 = vld [vmem:[%s3] sm:$0x1]
    %v75 = vlaneseq
    %v76 = vshrl.u32 %v75, 7
    %v77 = vsub.s32 0, %v76
    %v78 = vrot.slane %v73, %v77
    %v84 = vunpack.c.l.b16 %v69
    %v85 = vunpack.c.l.b16 %v70
    %v86 = vunpack.c.l.b16 %v71
    %v87 = vunpack.c.l.b16 %v72
    %v88 = vpack.c.b16 %v85, %v84
    %v89 = vpack.c.b16 %v87, %v86
    %vm92 = vcmask 261120
    %v94 = vsel %vm92, %v68, 0
    %96 = vmatprep.subr.bf16.mxu0 0
    %97 = vmatpush1.bf16.msra.mxu0 %v88
    %98 = vmatprep.subr.bf16.mxu0 0
    %99 = vmatpush1.bf16.msra.mxu0 %v89
    %100 = vmatprep.subr.bf16.mxu0 0
    %101 = vmatpush1.bf16.msra.mxu0 0
    %102 = vmatprep.subr.bf16.mxu0 0
    %103 = vmatpush1.bf16.msra.mxu0 0
    %104 = vmatprep.subr.bf16.mxu0 0
    %105 = vmatpush1.bf16.msra.mxu0 0
    %106 = vmatprep.subr.bf16.mxu0 0
    %107 = vmatpush1.bf16.msra.mxu0 0
    %108 = vmatprep.subr.bf16.mxu0 0
    %109 = vmatpush1.bf16.msra.mxu0 0
    %110 = vmatprep.subr.bf16.mxu0 0
    %111 = vmatpush1.bf16.msra.mxu0 0
    %112 = vmatprep.subr.bf16.mxu0 0
    %113 = vmatpush1.bf16.msra.mxu0 0
    %114 = vmatprep.subr.bf16.mxu0 0
    %115 = vmatpush1.bf16.msra.mxu0 0
    %116 = vmatprep.subr.bf16.mxu0 0
    %117 = vmatpush1.bf16.msra.mxu0 0
    %118 = vmatprep.subr.bf16.mxu0 0
    %119 = vmatpush1.bf16.msra.mxu0 0
    %120 = vmatprep.subr.bf16.mxu0 0
    %121 = vmatpush1.bf16.msra.mxu0 0
    %122 = vmatprep.subr.bf16.mxu0 0
    %123 = vmatpush1.bf16.msra.mxu0 0
    %124 = vmatprep.subr.bf16.mxu0 0
    %125 = vmatpush1.bf16.msra.mxu0 0
    %126 = vmatprep.subr.bf16.mxu0 0
    %127 = vmatpush1.bf16.msra.mxu0 0
    %128 = vmatprep.mubr.bf16.mxu0 0
    %129 = vmatmul.mubr.bf16.gmra.mrb[0].mxu0 %v94
    %v130 = vpop.f32.mrb[0].mxu0
    %v131 = vadd.f32 %v78, %v130
    %v132 = vpop.f32.mrb[0].mxu0
    %v133 = vpop.f32.mrb[0].mxu0
    %v134 = vadd.f32 %v78, %v133
    %v135 = vpop.f32.mrb[0].mxu0
    %136 = vdwg.mxu0
    %v137 = vld [vmem:[#allocation5] sm:$0xff]
    %v138 = vld [vmem:[#allocation5 + $0x8] sm:$0xff]
    %v139 = vadd.f32 %v131, %v137
    %v140 = vadd.f32 %v134, %v138
    %v141 = vld [vmem:[%s4] sm:$0x1]
    %v142 = vld [vmem:[%s5] sm:$0x1]
    %v143 = vsel %vm92, %v139, 0.0
    %144 = vadd.xlane.f32.xlu0 %v143
    %v145 = vpop.xlane.xlu0 %144
    %v146 = vsel %vm92, %v140, 0.0
    %147 = vadd.xlane.f32.xlu0 %v146
    %v148 = vpop.xlane.xlu0 %147
    %v149 = vrcp.pop 32.0
    %v150 = vmul.f32 %v145, %v149
    %v151 = vmul.f32 %v148, %v149
    %v152 = vsub.f32 %v139, %v150
    %v153 = vsub.f32 %v140, %v151
    %v154 = vmul.f32 %v152, %v152
    %v155 = vmul.f32 %v153, %v153
    %v156 = vsel %vm92, %v154, 0.0
    %157 = vadd.xlane.f32.xlu0 %v156
    %v158 = vpop.xlane.xlu0 %157
    %v159 = vsel %vm92, %v155, 0.0
    %160 = vadd.xlane.f32.xlu0 %v159
    %v161 = vpop.xlane.xlu0 %160
    %v162 = vmul.f32 %v158, %v149
    %v163 = vmul.f32 %v161, %v149
    %v164 = vadd.f32 %v162, 1e-12
    %v165 = vadd.f32 %v163, 1e-12
    %v166 = vrsqrt.pop %v164
    %v167 = vrsqrt.pop %v165
    %v168 = vmul.f32 %v152, %v166
    %v169 = vmul.f32 %v153, %v167
    %v171 = vlaneseq
    %v172 = vshrl.u32 %v171, 7
    %v173 = vsub.s32 0, %v172
    %v174 = vrot.slane %v141, %v173
    %v176 = vmul.f32 %v168, %v174
    %v177 = vmul.f32 %v169, %v174
    %v179 = vlaneseq
    %v180 = vshrl.u32 %v179, 7
    %v181 = vsub.s32 0, %v180
    %v182 = vrot.slane %v142, %v181
    %v184 = vadd.f32 %v176, %v182
    %v185 = vadd.f32 %v177, %v182
    %186 = vst.msk [vmem:[#allocation8] sm:$0xff] %vm92, %v184
    %187 = vst.msk [vmem:[#allocation8 + $0x8] sm:$0xff] %vm92, %v185
    // Predicated region
    $region38: #{tpu_custom_call.1} parent=1 // pred_check
      _
    $region39: #{tpu_custom_call.1} parent=1 // pred_check_branch
      %189 = sbr.rel (0) target = $region41
    $region40: #{tpu_custom_call.1} parent=1 // pred_region
      %s191 = ssub.s32 256, 256
      %192 = vsyncadd [#allocation4], %s191
      %s193 = sshll.u32 [#allocation8], 4
      %s194 = int_to_ptr.vmem [resolvable:$true] %s193
      %199 = dma.vmem_to_hbm [thread:$0]  %s194, 256, %s6, [#allocation4], 128, 128, 8
    $region41: #{tpu_custom_call.1} parent=1 // pred_fallthru
      _
    // Predicated region
    $region42: #{tpu_custom_call.1} parent=1 // pred_check
      _
    $region43: #{tpu_custom_call.1} parent=1 // pred_check_branch
      %201 = sbr.rel (0) target = $region45
    $region44: #{tpu_custom_call.1} parent=1 // pred_region
      %202 = dma.done [#allocation4], 256
    $region45: #{tpu_custom_call.1} parent=1 // pred_fallthru
      _
    %203 = vsyncpa [#allocation3], 1
    %204 = vsyncpa [#allocation6], 1
    %205 = vsyncpa [#allocation4], 1

</llo_original>
